<compile_context>
chip_gen: v7x
topology: tpu7x:2x2x1
jax: 0.10.0
libtpu: 0.0.40
codegen_flags: <defaults>
</compile_context>

<pallas_src>
import jax
import jax.numpy as jnp
from jax.experimental import pallas as pl
from jax.experimental.pallas import tpu as pltpu

_LANE = 128
_VMEM_LIMIT = 48 * 1024 * 1024   # safe on v5e/v6e (128 MiB) and v7x (64 MiB)


def _round_up(v, m):
    return ((v + m - 1) // m) * m


def _pad_last(a, target):
    pad = target - a.shape[-1]
    if pad == 0:
        return a
    widths = [(0, 0)] * (a.ndim - 1) + [(0, pad)]
    return jnp.pad(a, widths)


def _pad_2d(a, rows, cols):
    return jnp.pad(a, ((0, rows - a.shape[0]), (0, cols - a.shape[1])))


# ---------------------------------------------------------------------------
# Phase 1: pw_conv_1 -> GLU -> depthwise conv + BN partial statistics.
# One grid step per batch element; the full time axis stays in the block so
# the depthwise conv's SAME zero padding is local to the block (no halo DMA).
# TODO(synk): for very long T on v7x (64 MiB VMEM) this block could be split
# over time with halo blocks; not needed at typical Squeezeformer shapes.
# ---------------------------------------------------------------------------
def _phase1_kernel(x_ref, w1t_ref, b1_ref, wdw_ref, dw_ref, psum_ref, psq_ref):
    _, T, Cp = x_ref.shape
    K = wdw_ref.shape[0]
    pad = (K - 1) // 2

    x = x_ref[0]                                            # (T, Cp) f32

    # pointwise conv 1 (1x1 conv == channel matmul): bf16 in, f32 accumulate
    y = jnp.dot(x.astype(jnp.bfloat16), w1t_ref[...],
                preferred_element_type=jnp.float32)         # (T, 2*Cp)
    y = y + b1_ref[...]

    # GLU over channels (halves sit at lane-aligned offsets 0 and Cp)
    g = y[:, :Cp] * jax.nn.sigmoid(y[:, Cp:])               # (T, Cp) f32

    # depthwise conv along time, SAME padding, no bias.
    # tap k needs g[t + k - pad]: circular sublane roll (XLU) + iota mask for
    # the rows that would have read the zero padding.
    wdw = wdw_ref[...]                                      # (K, Cp)
    tidx = jax.lax.broadcasted_iota(jnp.int32, (T, Cp), 0)  # hoisted once
    acc = jnp.zeros((T, Cp), jnp.float32)
    for k in range(K):                                      # static unroll
        shift = pad - k                                     # rolled[t] = g[t - shift]
        s = shift % T
        rolled = g if s == 0 else pltpu.roll(g, shift=s, axis=0)
        if shift > 0:
            rolled = jnp.where(tidx >= shift, rolled, 0.0)
        elif shift < 0:
            rolled = jnp.where(tidx < T + shift, rolled, 0.0)
        acc = acc + rolled * wdw[k:k + 1, :]

    dw_ref[0] = acc
    # per-block BN partials; combined into batch mean/var outside the kernel
    psum_ref[...] = jnp.sum(acc, axis=0, keepdims=True)[None]
    psq_ref[...] = jnp.sum(acc * acc, axis=0, keepdims=True)[None]


# ---------------------------------------------------------------------------
# Phase 2: BN affine -> Swish -> pw_conv_2, tiled over B*T rows.
# ---------------------------------------------------------------------------
def _phase2_kernel(dw_ref, scale_ref, shift_ref, w2t_ref, b2_ref, o_ref):
    d = dw_ref[...]                                         # (tm, Cp) f32
    bn = d * scale_ref[...] + shift_ref[...]                # BatchNorm affine
    sw = bn * jax.nn.sigmoid(bn)                            # Swish
    out = jnp.dot(sw.astype(jnp.bfloat16), w2t_ref[...],
                  preferred_element_type=jnp.float32)       # pw_conv_2
    o_ref[...] = out + b2_ref[...]                          # dropout: identity


def conv_module_forward(x, params, *, kernel_size, eps=1e-5, row_tile=256):
    """x: (B, T, C) float32. Returns (B, T, C) float32 (ConvModule.forward)."""
    B, T, C = x.shape
    K = kernel_size
    assert (K - 1) % 2 == 0, "kernel_size must be odd for SAME padding"
    assert T > (K - 1) // 2, "time dim must exceed the conv half-width"
    w1t, b1, wdw, gamma, beta, w2t, b2 = params

    Cp = _round_up(C, _LANE)                                # lane-dense channels

    # --- pad params / input to the lane-dense channel width -----------------
    # keep the two GLU halves at lane-aligned offsets 0 and Cp
    w1t_p = jnp.concatenate(
        [_pad_2d(w1t[:, :C], Cp, Cp), _pad_2d(w1t[:, C:], Cp, Cp)], axis=1)
    b1_p = jnp.concatenate(
        [_pad_last(b1[:, :C], Cp), _pad_last(b1[:, C:], Cp)], axis=1)
    wdw_p = _pad_last(wdw, Cp)
    gamma_p = _pad_last(gamma, Cp)
    beta_p = _pad_last(beta, Cp)
    w2t_p = _pad_2d(w2t, Cp, Cp)
    b2_p = _pad_last(b2, Cp)
    x_p = _pad_last(x, Cp)

    # bf16 MXU operands (accumulation stays f32 inside the kernels)
    w1t_b = w1t_p.astype(jnp.bfloat16)
    w2t_b = w2t_p.astype(jnp.bfloat16)

    cparams = pltpu.CompilerParams(
        dimension_semantics=("parallel",),
        vmem_limit_bytes=_VMEM_LIMIT)

    # --- phase 1 -------------------------------------------------------------
    dwout, psum, psq = pl.pallas_call(
        _phase1_kernel,
        out_shape=(
            jax.ShapeDtypeStruct((B, T, Cp), jnp.float32),
            jax.ShapeDtypeStruct((B, 1, Cp), jnp.float32),
            jax.ShapeDtypeStruct((B, 1, Cp), jnp.float32),
        ),
        grid=(B,),
        in_specs=[
            pl.BlockSpec((1, T, Cp), lambda b: (b, 0, 0)),   # x
            pl.BlockSpec((Cp, 2 * Cp), lambda b: (0, 0)),    # w1^T (bf16)
            pl.BlockSpec((1, 2 * Cp), lambda b: (0, 0)),     # b1
            pl.BlockSpec((K, Cp), lambda b: (0, 0)),         # depthwise weights
        ],
        out_specs=[
            pl.BlockSpec((1, T, Cp), lambda b: (b, 0, 0)),   # dw-conv output
            pl.BlockSpec((1, 1, Cp), lambda b: (b, 0, 0)),   # partial sum
            pl.BlockSpec((1, 1, Cp), lambda b: (b, 0, 0)),   # partial sumsq
        ],
        compiler_params=cparams,
    )(x_p, w1t_b, b1_p, wdw_p)

    # --- BatchNorm1d statistics (training-mode batch stats), tiny XLA glue ---
    # TODO(synk): sum/sumsq partials (f32) can lose precision at huge B*T;
    # Welford-style per-tile (mean, M2) combine would be the robust variant.
    n = B * T
    total = jnp.sum(psum[:, 0, :], axis=0)                  # (Cp,)
    total_sq = jnp.sum(psq[:, 0, :], axis=0)
    mean = total / n
    var = jnp.maximum(total_sq / n - mean * mean, 0.0)      # biased variance
    inv = jax.lax.rsqrt(var + eps)
    scale = gamma_p * inv[None, :]                          # (1, Cp)
    shift = beta_p - mean[None, :] * scale                  # (1, Cp)

    # --- phase 2 -------------------------------------------------------------
    dwflat = dwout.reshape(n, Cp)
    tm = _round_up(min(row_tile, n), 8)
    n_pad = _round_up(n, tm)
    if n_pad != n:
        dwflat = jnp.pad(dwflat, ((0, n_pad - n), (0, 0)))

    out_p = pl.pallas_call(
        _phase2_kernel,
        out_shape=jax.ShapeDtypeStruct((n_pad, Cp), jnp.float32),
        grid=(n_pad // tm,),
        in_specs=[
            pl.BlockSpec((tm, Cp), lambda i: (i, 0)),        # dw-conv rows
            pl.BlockSpec((1, Cp), lambda i: (0, 0)),         # BN scale
            pl.BlockSpec((1, Cp), lambda i: (0, 0)),         # BN shift
            pl.BlockSpec((Cp, Cp), lambda i: (0, 0)),        # w2^T (bf16)
            pl.BlockSpec((1, Cp), lambda i: (0, 0)),         # b2
        ],
        out_specs=pl.BlockSpec((tm, Cp), lambda i: (i, 0)),
        compiler_params=cparams,
    )(dwflat, scale, shift, w2t_b, b2_p)

    return out_p[:n, :C].reshape(B, T, C)


def reference_forward(x, params, *, kernel_size, eps=1e-5):
    """Pure-JAX reference mirroring ConvModule.forward (and the kernel's
    bf16-input / f32-accumulate matmul precision policy)."""
    B, T, C = x.shape
    K = kernel_size
    pad = (K - 1) // 2
    w1t, b1, wdw, gamma, beta, w2t, b2 = params

    def bdot(a, w):
        return jnp.dot(a.astype(jnp.bfloat16), w.astype(jnp.bfloat16),
                       preferred_element_type=jnp.float32)

    x2 = x.reshape(B * T, C)
    y = bdot(x2, w1t) + b1
    out_half, gate_half = y[:, :C], y[:, C:]
    g = (out_half * jax.nn.sigmoid(gate_half)).reshape(B, T, C)

    gp = jnp.pad(g, ((0, 0), (pad, pad), (0, 0)))
    acc = jnp.zeros((B, T, C), jnp.float32)
    for k in range(K):
        acc = acc + gp[:, k:k + T, :] * wdw[k][None, None, :]

    flat = acc.reshape(B * T, C)
    mean = flat.mean(axis=0, keepdims=True)
    var = ((flat - mean) ** 2).mean(axis=0, keepdims=True)
    bn = (flat - mean) * jax.lax.rsqrt(var + eps) * gamma + beta
    sw = bn * jax.nn.sigmoid(bn)
    out2 = bdot(sw, w2t) + b2
    return out2.reshape(B, T, C)


if __name__ == "__main__":
    # Small, ConvModule-consistent shapes: input is (batch, time, channels).
    B, T, C = 2, 16, 8
    KSIZE = 7          # odd -> SAME padding assertion holds
    EXP = 2            # expansion_factor == 2 (only supported value)

    key = jax.random.PRNGKey(0)
    k_x, k_w1, k_b1, k_wdw, k_g, k_b, k_w2, k_b2 = jax.random.split(key, 8)

    x = jax.random.normal(k_x, (B, T, C), dtype=jnp.float32)

    # Deterministic synthetic parameters (shapes follow the nn.Conv1d defs).
    w1 = jax.random.normal(k_w1, (EXP * C, C), dtype=jnp.float32) * 0.3
    b1 = jax.random.normal(k_b1, (EXP * C,), dtype=jnp.float32) * 0.1
    wdw = jax.random.normal(k_wdw, (C, KSIZE), dtype=jnp.float32) * 0.3
    gamma = 1.0 + 0.1 * jax.random.normal(k_g, (C,), dtype=jnp.float32)
    beta = 0.1 * jax.random.normal(k_b, (C,), dtype=jnp.float32)
    w2 = jax.random.normal(k_w2, (C, C), dtype=jnp.float32) * 0.3
    b2 = jax.random.normal(k_b2, (C,), dtype=jnp.float32) * 0.1

    params = (
        w1.T,                     # (C, 2C)   pw_conv_1 weight, transposed
        b1.reshape(1, EXP * C),   # (1, 2C)
        wdw.T,                    # (K, C)    depthwise weight
        gamma.reshape(1, C),      # (1, C)
        beta.reshape(1, C),       # (1, C)
        w2.T,                     # (C, C)    pw_conv_2 weight, transposed
        b2.reshape(1, C),         # (1, C)
    )

    out = conv_module_forward(x, params, kernel_size=KSIZE)
    out = jax.block_until_ready(out)

    ref = reference_forward(x, params, kernel_size=KSIZE)
    assert out.shape == (B, T, C)
    max_err = float(jnp.max(jnp.abs(out - ref)))
    assert jnp.allclose(out, ref, atol=5e-3, rtol=5e-3), f"mismatch: {max_err}"

    print("KERNEL_OK")
</pallas_src>

<mosaic_0001>
module attributes {stable_mosaic.version = 11 : i64} {
  func.func @_phase1_kernel(%arg0: i32, %arg1: memref<1x16x128xf32, #tpu.memory_space<vmem>>, %arg2: memref<128x256xbf16, #tpu.memory_space<vmem>>, %arg3: memref<1x256xf32, #tpu.memory_space<vmem>>, %arg4: memref<7x128xf32, #tpu.memory_space<vmem>>, %arg5: memref<1x16x128xf32, #tpu.memory_space<vmem>>, %arg6: memref<1x1x128xf32, #tpu.memory_space<vmem>>, %arg7: memref<1x1x128xf32, #tpu.memory_space<vmem>>) attributes {dimension_semantics = [#tpu.dimension_semantics<parallel>], iteration_bounds = array<i64: 2>, scalar_prefetch = 0 : i64, scratch_operands = 0 : i64, tpu.core_type = #tpu.core_type<tc>, window_params = [{transform_indices = @transform_0, window_bounds = array<i64: 1, 16, 128>}, {pipeline_mode = #tpu.pipeline_mode<synchronous>, transform_indices = @transform_1, window_bounds = array<i64: 128, 256>}, {pipeline_mode = #tpu.pipeline_mode<synchronous>, transform_indices = @transform_2, window_bounds = array<i64: 1, 256>}, {pipeline_mode = #tpu.pipeline_mode<synchronous>, transform_indices = @transform_3, window_bounds = array<i64: 7, 128>}, {transform_indices = @transform_4, window_bounds = array<i64: 1, 16, 128>}, {transform_indices = @transform_5, window_bounds = array<i64: 1, 1, 128>}, {transform_indices = @transform_6, window_bounds = array<i64: 1, 1, 128>}]} {
    %c0 = arith.constant 0 : index
    %c0_0 = arith.constant 0 : index
    %c0_1 = arith.constant 0 : index
    %0 = vector.load %arg1[%c0, %c0_0, %c0_1] : memref<1x16x128xf32, #tpu.memory_space<vmem>>, vector<1x16x128xf32>
    %1 = vector.shape_cast %0 : vector<1x16x128xf32> to vector<16x128xf32>
    %2 = arith.truncf %1 : vector<16x128xf32> to vector<16x128xbf16>
    %c0_2 = arith.constant 0 : index
    %c0_3 = arith.constant 0 : index
    %3 = vector.load %arg2[%c0_2, %c0_3] : memref<128x256xbf16, #tpu.memory_space<vmem>>, vector<128x256xbf16>
    %cst = arith.constant dense<0.000000e+00> : vector<16x256xf32>
    %4 = tpu.matmul %2, %3, %cst {dimension_numbers = #tpu.dot_dimension_numbers<[1], [0], [0], [1], [0, 0, 1, 1], [], []>} : vector<16x128xbf16>, vector<128x256xbf16>, vector<16x256xf32> -> vector<16x256xf32>
    %c0_4 = arith.constant 0 : index
    %c0_5 = arith.constant 0 : index
    %5 = vector.load %arg3[%c0_4, %c0_5] : memref<1x256xf32, #tpu.memory_space<vmem>>, vector<1x256xf32>
    %6 = vector.broadcast %5 : vector<1x256xf32> to vector<16x256xf32>
    %7 = arith.addf %4, %6 : vector<16x256xf32>
    %8 = vector.extract_strided_slice %7 {offsets = [0, 0], sizes = [16, 128], strides = [1, 1]} : vector<16x256xf32> to vector<16x128xf32>
    %9 = vector.extract_strided_slice %7 {offsets = [0, 128], sizes = [16, 128], strides = [1, 1]} : vector<16x256xf32> to vector<16x128xf32>
    %10 = arith.negf %9 : vector<16x128xf32>
    %11 = math.exp %10 : vector<16x128xf32>
    %cst_6 = arith.constant 1.000000e+00 : f32
    %12 = vector.broadcast %cst_6 : f32 to vector<16x128xf32>
    %13 = arith.addf %12, %11 : vector<16x128xf32>
    %14 = arith.divf %12, %13 : vector<16x128xf32>
    %15 = arith.mulf %8, %14 : vector<16x128xf32>
    %c0_7 = arith.constant 0 : index
    %c0_8 = arith.constant 0 : index
    %16 = vector.load %arg4[%c0_7, %c0_8] : memref<7x128xf32, #tpu.memory_space<vmem>>, vector<7x128xf32>
    %17 = tpu.iota {dimensions = array<i32: 0>} : vector<16x128xi32>
    %cst_9 = arith.constant 0.000000e+00 : f32
    %18 = vector.broadcast %cst_9 : f32 to vector<16x128xf32>
    %c3_i32 = arith.constant 3 : i32
    %19 = tpu.dynamic_rotate %15 by %c3_i32 dim 0 : vector<16x128xf32>, i32 -> vector<16x128xf32>
    %c3_i32_10 = arith.constant 3 : i32
    %20 = vector.broadcast %c3_i32_10 : i32 to vector<16x128xi32>
    %21 = arith.cmpi sge, %17, %20 : vector<16x128xi32>
    %cst_11 = arith.constant 0.000000e+00 : f32
    %22 = vector.broadcast %cst_11 : f32 to vector<16x128xf32>
    %23 = arith.select %21, %19, %22 : vector<16x128xi1>, vector<16x128xf32>
    %24 = vector.extract_strided_slice %16 {offsets = [0, 0], sizes = [1, 128], strides = [1, 1]} : vector<7x128xf32> to vector<1x128xf32>
    %25 = vector.broadcast %24 : vector<1x128xf32> to vector<16x128xf32>
    %26 = arith.mulf %23, %25 : vector<16x128xf32>
    %27 = arith.addf %18, %26 : vector<16x128xf32>
    %c2_i32 = arith.constant 2 : i32
    %28 = tpu.dynamic_rotate %15 by %c2_i32 dim 0 : vector<16x128xf32>, i32 -> vector<16x128xf32>
    %c2_i32_12 = arith.constant 2 : i32
    %29 = vector.broadcast %c2_i32_12 : i32 to vector<16x128xi32>
    %30 = arith.cmpi sge, %17, %29 : vector<16x128xi32>
    %cst_13 = arith.constant 0.000000e+00 : f32
    %31 = vector.broadcast %cst_13 : f32 to vector<16x128xf32>
    %32 = arith.select %30, %28, %31 : vector<16x128xi1>, vector<16x128xf32>
    %33 = vector.extract_strided_slice %16 {offsets = [1, 0], sizes = [1, 128], strides = [1, 1]} : vector<7x128xf32> to vector<1x128xf32>
    %34 = vector.broadcast %33 : vector<1x128xf32> to vector<16x128xf32>
    %35 = arith.mulf %32, %34 : vector<16x128xf32>
    %36 = arith.addf %27, %35 : vector<16x128xf32>
    %c1_i32 = arith.constant 1 : i32
    %37 = tpu.dynamic_rotate %15 by %c1_i32 dim 0 : vector<16x128xf32>, i32 -> vector<16x128xf32>
    %c1_i32_14 = arith.constant 1 : i32
    %38 = vector.broadcast %c1_i32_14 : i32 to vector<16x128xi32>
    %39 = arith.cmpi sge, %17, %38 : vector<16x128xi32>
    %cst_15 = arith.constant 0.000000e+00 : f32
    %40 = vector.broadcast %cst_15 : f32 to vector<16x128xf32>
    %41 = arith.select %39, %37, %40 : vector<16x128xi1>, vector<16x128xf32>
    %42 = vector.extract_strided_slice %16 {offsets = [2, 0], sizes = [1, 128], strides = [1, 1]} : vector<7x128xf32> to vector<1x128xf32>
    %43 = vector.broadcast %42 : vector<1x128xf32> to vector<16x128xf32>
    %44 = arith.mulf %41, %43 : vector<16x128xf32>
    %45 = arith.addf %36, %44 : vector<16x128xf32>
    %46 = vector.extract_strided_slice %16 {offsets = [3, 0], sizes = [1, 128], strides = [1, 1]} : vector<7x128xf32> to vector<1x128xf32>
    %47 = vector.broadcast %46 : vector<1x128xf32> to vector<16x128xf32>
    %48 = arith.mulf %15, %47 : vector<16x128xf32>
    %49 = arith.addf %45, %48 : vector<16x128xf32>
    %c15_i32 = arith.constant 15 : i32
    %50 = tpu.dynamic_rotate %15 by %c15_i32 dim 0 : vector<16x128xf32>, i32 -> vector<16x128xf32>
    %c15_i32_16 = arith.constant 15 : i32
    %51 = vector.broadcast %c15_i32_16 : i32 to vector<16x128xi32>
    %52 = arith.cmpi slt, %17, %51 : vector<16x128xi32>
    %cst_17 = arith.constant 0.000000e+00 : f32
    %53 = vector.broadcast %cst_17 : f32 to vector<16x128xf32>
    %54 = arith.select %52, %50, %53 : vector<16x128xi1>, vector<16x128xf32>
    %55 = vector.extract_strided_slice %16 {offsets = [4, 0], sizes = [1, 128], strides = [1, 1]} : vector<7x128xf32> to vector<1x128xf32>
    %56 = vector.broadcast %55 : vector<1x128xf32> to vector<16x128xf32>
    %57 = arith.mulf %54, %56 : vector<16x128xf32>
    %58 = arith.addf %49, %57 : vector<16x128xf32>
    %c14_i32 = arith.constant 14 : i32
    %59 = tpu.dynamic_rotate %15 by %c14_i32 dim 0 : vector<16x128xf32>, i32 -> vector<16x128xf32>
    %c14_i32_18 = arith.constant 14 : i32
    %60 = vector.broadcast %c14_i32_18 : i32 to vector<16x128xi32>
    %61 = arith.cmpi slt, %17, %60 : vector<16x128xi32>
    %cst_19 = arith.constant 0.000000e+00 : f32
    %62 = vector.broadcast %cst_19 : f32 to vector<16x128xf32>
    %63 = arith.select %61, %59, %62 : vector<16x128xi1>, vector<16x128xf32>
    %64 = vector.extract_strided_slice %16 {offsets = [5, 0], sizes = [1, 128], strides = [1, 1]} : vector<7x128xf32> to vector<1x128xf32>
    %65 = vector.broadcast %64 : vector<1x128xf32> to vector<16x128xf32>
    %66 = arith.mulf %63, %65 : vector<16x128xf32>
    %67 = arith.addf %58, %66 : vector<16x128xf32>
    %c13_i32 = arith.constant 13 : i32
    %68 = tpu.dynamic_rotate %15 by %c13_i32 dim 0 : vector<16x128xf32>, i32 -> vector<16x128xf32>
    %c13_i32_20 = arith.constant 13 : i32
    %69 = vector.broadcast %c13_i32_20 : i32 to vector<16x128xi32>
    %70 = arith.cmpi slt, %17, %69 : vector<16x128xi32>
    %cst_21 = arith.constant 0.000000e+00 : f32
    %71 = vector.broadcast %cst_21 : f32 to vector<16x128xf32>
    %72 = arith.select %70, %68, %71 : vector<16x128xi1>, vector<16x128xf32>
    %73 = vector.extract_strided_slice %16 {offsets = [6, 0], sizes = [1, 128], strides = [1, 1]} : vector<7x128xf32> to vector<1x128xf32>
    %74 = vector.broadcast %73 : vector<1x128xf32> to vector<16x128xf32>
    %75 = arith.mulf %72, %74 : vector<16x128xf32>
    %76 = arith.addf %67, %75 : vector<16x128xf32>
    %c0_22 = arith.constant 0 : index
    %c0_23 = arith.constant 0 : index
    %c0_24 = arith.constant 0 : index
    %77 = vector.load %arg5[%c0_22, %c0_23, %c0_24] : memref<1x16x128xf32, #tpu.memory_space<vmem>>, vector<1x16x128xf32>
    %78 = vector.shape_cast %77 : vector<1x16x128xf32> to vector<16x128xf32>
    %79 = vector.shape_cast %76 : vector<16x128xf32> to vector<1x16x128xf32>
    tpu.vector_store %arg5[%c0_22, %c0_23, %c0_24], %79 {strides = array<i32>} : memref<1x16x128xf32, #tpu.memory_space<vmem>>, vector<1x16x128xf32>,
    %cst_25 = arith.constant dense<0.000000e+00> : vector<128xf32>
    %80 = vector.multi_reduction <add>, %76, %cst_25 [0] : vector<16x128xf32> to vector<128xf32>
    %81 = vector.shape_cast %80 : vector<128xf32> to vector<1x128xf32>
    %82 = vector.shape_cast %81 : vector<1x128xf32> to vector<1x1x128xf32>
    %c0_26 = arith.constant 0 : index
    %c0_27 = arith.constant 0 : index
    %c0_28 = arith.constant 0 : index
    %83 = vector.load %arg6[%c0_26, %c0_27, %c0_28] : memref<1x1x128xf32, #tpu.memory_space<vmem>>, vector<1x1x128xf32>
    tpu.vector_store %arg6[%c0_26, %c0_27, %c0_28], %82 {strides = array<i32>} : memref<1x1x128xf32, #tpu.memory_space<vmem>>, vector<1x1x128xf32>,
    %84 = arith.mulf %76, %76 : vector<16x128xf32>
    %cst_29 = arith.constant dense<0.000000e+00> : vector<128xf32>
    %85 = vector.multi_reduction <add>, %84, %cst_29 [0] : vector<16x128xf32> to vector<128xf32>
    %86 = vector.shape_cast %85 : vector<128xf32> to vector<1x128xf32>
    %87 = vector.shape_cast %86 : vector<1x128xf32> to vector<1x1x128xf32>
    %c0_30 = arith.constant 0 : index
    %c0_31 = arith.constant 0 : index
    %c0_32 = arith.constant 0 : index
    %88 = vector.load %arg7[%c0_30, %c0_31, %c0_32] : memref<1x1x128xf32, #tpu.memory_space<vmem>>, vector<1x1x128xf32>
    tpu.vector_store %arg7[%c0_30, %c0_31, %c0_32], %87 {strides = array<i32>} : memref<1x1x128xf32, #tpu.memory_space<vmem>>, vector<1x1x128xf32>,
    return
  }
  func.func @transform_0(%arg0: i32) -> (i32, i32, i32) {
    %c0_i32 = arith.constant 0 : i32
    %c0_i32_0 = arith.constant 0 : i32
    %c0_i32_1 = arith.constant 0 : i32
    return %arg0, %c0_i32, %c0_i32_0 : i32, i32, i32
  }
  func.func @transform_1(%arg0: i32) -> (i32, i32) {
    %c0_i32 = arith.constant 0 : i32
    %c0_i32_0 = arith.constant 0 : i32
    %c0_i32_1 = arith.constant 0 : i32
    return %c0_i32, %c0_i32_0 : i32, i32
  }
  func.func @transform_2(%arg0: i32) -> (i32, i32) {
    %c0_i32 = arith.constant 0 : i32
    %c0_i32_0 = arith.constant 0 : i32
    %c0_i32_1 = arith.constant 0 : i32
    return %c0_i32, %c0_i32_0 : i32, i32
  }
  func.func @transform_3(%arg0: i32) -> (i32, i32) {
    %c0_i32 = arith.constant 0 : i32
    %c0_i32_0 = arith.constant 0 : i32
    %c0_i32_1 = arith.constant 0 : i32
    return %c0_i32, %c0_i32_0 : i32, i32
  }
  func.func @transform_4(%arg0: i32) -> (i32, i32, i32) {
    %c0_i32 = arith.constant 0 : i32
    %c0_i32_0 = arith.constant 0 : i32
    %c0_i32_1 = arith.constant 0 : i32
    return %arg0, %c0_i32, %c0_i32_0 : i32, i32, i32
  }
  func.func @transform_5(%arg0: i32) -> (i32, i32, i32) {
    %c0_i32 = arith.constant 0 : i32
    %c0_i32_0 = arith.constant 0 : i32
    %c0_i32_1 = arith.constant 0 : i32
    return %arg0, %c0_i32, %c0_i32_0 : i32, i32, i32
  }
  func.func @transform_6(%arg0: i32) -> (i32, i32, i32) {
    %c0_i32 = arith.constant 0 : i32
    %c0_i32_0 = arith.constant 0 : i32
    %c0_i32_1 = arith.constant 0 : i32
    return %arg0, %c0_i32, %c0_i32_0 : i32, i32, i32
  }
}

</mosaic_0001>

<llo_original>
// kernel: tpu_custom_call.1
$region0: #{tpu_custom_call.1}
  #allocation0 [shape = 'u32[]', space=smem, size = 0x4, offset = 0x4, fixed_abs, tag = 'smem constant byte address 0x4 - core index']
  #allocation1 [shape = 'u32[144,128]{1,0:T(1,128)}', space=vmem, size = 0x12000, scoped, tag = 'internal scratch']
  %s0 = inlined_call_operand.hbm [shape: f32[2,16,128], index: 0, kind: input, shape index: {}]
  %s1 = inlined_call_operand.hbm [shape: bf16[128,256], index: 1, kind: input, shape index: {}]
  %s2 = inlined_call_operand.vmem [shape: f32[1,256], index: 2, kind: input, shape index: {}]
  %s3 = inlined_call_operand.vmem [shape: f32[7,128], index: 3, kind: input, shape index: {}]
  %s4 = inlined_call_operand.hbm [shape: f32[2,16,128], index: 4, kind: output, shape index: {0}]
  %s5 = inlined_call_operand.hbm [shape: f32[2,1,128], index: 5, kind: output, shape index: {1}]
  %s6 = inlined_call_operand.hbm [shape: f32[2,1,128], index: 6, kind: output, shape index: {2}]
  %7 = xla_tuple %s4, %s5, %s6
  %s8 = sld [smem:[#allocation0]]
  $region73: #{tpu_custom_call.1} parent=0
    _
  %s10 = ssub.s32 1, %s8
  %s11 = scalar_select 0, %s10, %s8
  $region1: #{tpu_custom_call.1} parent=0
    #allocation2 [shape = 'u8[16384]{0}', space=vmem, size = 0x4000, scoped, tag = 'input window, operand 0']
    #allocation3 [shape = 's32[2]{0}', space=sflag, size = 0x8, scoped, tag = 'scoped memory for tpu_custom_call.1']
    #allocation4 [shape = 's32[2]{0}', space=sflag, size = 0x8, scoped, tag = 'scoped memory for tpu_custom_call.1']
    #allocation5 [shape = 'u8[65536]{0}', space=vmem, size = 0x10000, scoped, tag = 'input window, operand 1, single buffered']
    #allocation6 [shape = 's32[1]{0}', space=sflag, size = 0x4, scoped, tag = 'scoped memory for tpu_custom_call.1']
    #allocation7 [shape = 'u8[16384]{0}', space=vmem, size = 0x4000, scoped, tag = 'output window, operand 0']
    #allocation8 [shape = 'u8[1024]{0}', space=vmem, size = 0x400, scoped, tag = 'output window, operand 1']
    #allocation9 [shape = 's32[2]{0}', space=sflag, size = 0x8, scoped, tag = 'scoped memory for tpu_custom_call.1']
    #allocation10 [shape = 'u8[1024]{0}', space=vmem, size = 0x400, scoped, tag = 'output window, operand 2']
    %12 = vsyncpa [#allocation3], 0
    %s13 = scalar_lea.sflag [#allocation3], 1
    %14 = vsyncpa %s13, 0
    %15 = vsyncpa [#allocation6], 0
    %16 = vsyncpa [#allocation4], 0
    %s17 = scalar_lea.sflag [#allocation4], 1
    %18 = vsyncpa %s17, 0
    %19 = vsyncpa [#allocation9], 0
    %s20 = scalar_lea.sflag [#allocation9], 1
    %21 = vsyncpa %s20, 0
    loop: start=0, step=1, limit=4
    $region2: #{tpu_custom_call.1} parent=1 // loop_pre_header
      _
    $region3: #{tpu_custom_call.1} parent=1 // loop_header
      %s23 = sphi 0, %s27
      %p24 = scmp.ge.s32.totalorder %s23, 4
      %s33 = sphi 0, %s35
      %s36 = sphi 0, %s33
      %s37 = sphi 0, %s36
      %s53 = sphi 0, %s37
      %s57 = sphi 0, %s57
      %s59 = sphi 0, %s57
      %s60 = sphi 0, %s59
      %s74 = sphi 0, %s60
      %s78 = sphi 0, %s78
      %s80 = sphi 0, %s78
      %s81 = sphi 0, %s80
      %s95 = sphi 0, %s81
      %s99 = sphi 0, %s99
      %s101 = sphi 0, %s99
      %s102 = sphi 0, %s101
      %s116 = sphi 0, %s102
      %s122 = sphi 0, %s124
      %s125 = sphi 0, %s122
      %s126 = sphi 0, %s125
      %s142 = sphi 0, %s126
      %s148 = sphi 0, %s150
      %s151 = sphi 0, %s148
      %s152 = sphi 0, %s151
      %s168 = sphi 0, %s152
      %s174 = sphi 0, %s176
      %s177 = sphi 0, %s174
      %s178 = sphi 0, %s177
      %s194 = sphi 0, %s178
    $region4: #{tpu_custom_call.1} parent=1 // loop_header_branch
      %26 = sbr.rel (%p24) target = $region8
    $region5: #{tpu_custom_call.1} parent=1 // loop_body
      %s28 = ssub.s32 %s23, 1
      %s29 = ssub.s32 %s23, 2
      %s30 = sadd.s32 %s23, 1
      %s31 = ssub.s32 %s23, %s30
      %p32 = scmp.eq.s32.totalorder %s31, 0
      %s34 = sadd.s32 %s33, 1
      %s35 = scalar_select %p32, %s33, %s34
      %p38 = pneg %p32
      %p39 = scmp.eq.s32.totalorder %s23, 1
      %p40 = por %p38, %p39
      %p41 = scmp.ne.s32.totalorder %s33, %s36
      %p42 = scmp.eq.s32.totalorder %s23, 0
      %p43 = por %p41, %p42
      %p44 = scmp.ne.s32.totalorder %s33, %s36
      %p45 = scmp.eq.s32.totalorder %s28, 1
      %p46 = por %p44, %p45
      %p47 = scmp.ne.s32.totalorder %s36, %s37
      %p48 = scmp.eq.s32.totalorder %s28, 0
      %p49 = por %p47, %p48
      %p50 = scmp.ne.s32.totalorder %s36, %s37
      %p51 = scmp.eq.s32.totalorder %s29, 1
      %p52 = por %p50, %p51
      %p54 = scmp.ne.s32.totalorder %s37, %s53
      %p55 = scmp.eq.s32.totalorder %s29, 0
      %p56 = por %p54, %p55
      %s58 = sadd.s32 %s57, 1
      %p61 = scmp.eq.s32.totalorder %s23, 1
      %p62 = scmp.ne.s32.totalorder %s57, %s59
      %p63 = scmp.eq.s32.totalorder %s23, 0
      %p64 = por %p62, %p63
      %p65 = scmp.ne.s32.totalorder %s57, %s59
      %p66 = scmp.eq.s32.totalorder %s28, 1
      %p67 = por %p65, %p66
      %p68 = scmp.ne.s32.totalorder %s59, %s60
      %p69 = scmp.eq.s32.totalorder %s28, 0
      %p70 = por %p68, %p69
      %p71 = scmp.ne.s32.totalorder %s59, %s60
      %p72 = scmp.eq.s32.totalorder %s29, 1
      %p73 = por %p71, %p72
      %p75 = scmp.ne.s32.totalorder %s60, %s74
      %p76 = scmp.eq.s32.totalorder %s29, 0
      %p77 = por %p75, %p76
      %s79 = sadd.s32 %s78, 1
      %p82 = scmp.eq.s32.totalorder %s23, 1
      %p83 = scmp.ne.s32.totalorder %s78, %s80
      %p84 = scmp.eq.s32.totalorder %s23, 0
      %p85 = por %p83, %p84
      %p86 = scmp.ne.s32.totalorder %s78, %s80
      %p87 = scmp.eq.s32.totalorder %s28, 1
      %p88 = por %p86, %p87
      %p89 = scmp.ne.s32.totalorder %s80, %s81
      %p90 = scmp.eq.s32.totalorder %s28, 0
      %p91 = por %p89, %p90
      %p92 = scmp.ne.s32.totalorder %s80, %s81
      %p93 = scmp.eq.s32.totalorder %s29, 1
      %p94 = por %p92, %p93
      %p96 = scmp.ne.s32.totalorder %s81, %s95
      %p97 = scmp.eq.s32.totalorder %s29, 0
      %p98 = por %p96, %p97
      %s100 = sadd.s32 %s99, 1
      %p103 = scmp.eq.s32.totalorder %s23, 1
      %p104 = scmp.ne.s32.totalorder %s99, %s101
      %p105 = scmp.eq.s32.totalorder %s23, 0
      %p106 = por %p104, %p105
      %p107 = scmp.ne.s32.totalorder %s99, %s101
      %p108 = scmp.eq.s32.totalorder %s28, 1
      %p109 = por %p107, %p108
      %p110 = scmp.ne.s32.totalorder %s101, %s102
      %p111 = scmp.eq.s32.totalorder %s28, 0
      %p112 = por %p110, %p111
      %p113 = scmp.ne.s32.totalorder %s101, %s102
      %p114 = scmp.eq.s32.totalorder %s29, 1
      %p115 = por %p113, %p114
      %p117 = scmp.ne.s32.totalorder %s102, %s116
      %p118 = scmp.eq.s32.totalorder %s29, 0
      %p119 = por %p117, %p118
      %s120 = ssub.s32 %s23, %s30
      %p121 = scmp.eq.s32.totalorder %s120, 0
      %s123 = sadd.s32 %s122, 1
      %s124 = scalar_select %p121, %s122, %s123
      %p127 = pneg %p121
      %p128 = scmp.eq.s32.totalorder %s23, 1
      %p129 = por %p127, %p128
      %p130 = scmp.ne.s32.totalorder %s122, %s125
      %p131 = scmp.eq.s32.totalorder %s23, 0
      %p132 = por %p130, %p131
      %p133 = scmp.ne.s32.totalorder %s122, %s125
      %p134 = scmp.eq.s32.totalorder %s28, 1
      %p135 = por %p133, %p134
      %p136 = scmp.ne.s32.totalorder %s125, %s126
      %p137 = scmp.eq.s32.totalorder %s28, 0
      %p138 = por %p136, %p137
      %p139 = scmp.ne.s32.totalorder %s125, %s126
      %p140 = scmp.eq.s32.totalorder %s29, 1
      %p141 = por %p139, %p140
      %p143 = scmp.ne.s32.totalorder %s126, %s142
      %p144 = scmp.eq.s32.totalorder %s29, 0
      %p145 = por %p143, %p144
      %s146 = ssub.s32 %s23, %s30
      %p147 = scmp.eq.s32.totalorder %s146, 0
      %s149 = sadd.s32 %s148, 1
      %s150 = scalar_select %p147, %s148, %s149
      %p153 = pneg %p147
      %p154 = scmp.eq.s32.totalorder %s23, 1
      %p155 = por %p153, %p154
      %p156 = scmp.ne.s32.totalorder %s148, %s151
      %p157 = scmp.eq.s32.totalorder %s23, 0
      %p158 = por %p156, %p157
      %p159 = scmp.ne.s32.totalorder %s148, %s151
      %p160 = scmp.eq.s32.totalorder %s28, 1
      %p161 = por %p159, %p160
      %p162 = scmp.ne.s32.totalorder %s151, %s152
      %p163 = scmp.eq.s32.totalorder %s28, 0
      %p164 = por %p162, %p163
      %p165 = scmp.ne.s32.totalorder %s151, %s152
      %p166 = scmp.eq.s32.totalorder %s29, 1
      %p167 = por %p165, %p166
      %p169 = scmp.ne.s32.totalorder %s152, %s168
      %p170 = scmp.eq.s32.totalorder %s29, 0
      %p171 = por %p169, %p170
      %s172 = ssub.s32 %s23, %s30
      %p173 = scmp.eq.s32.totalorder %s172, 0
      %s175 = sadd.s32 %s174, 1
      %s176 = scalar_select %p173, %s174, %s175
      %p179 = pneg %p173
      %p180 = scmp.eq.s32.totalorder %s23, 1
      %p181 = por %p179, %p180
      %p182 = scmp.ne.s32.totalorder %s174, %s177
      %p183 = scmp.eq.s32.totalorder %s23, 0
      %p184 = por %p182, %p183
      %p185 = scmp.ne.s32.totalorder %s174, %s177
      %p186 = scmp.eq.s32.totalorder %s28, 1
      %p187 = por %p185, %p186
      %p188 = scmp.ne.s32.totalorder %s177, %s178
      %p189 = scmp.eq.s32.totalorder %s28, 0
      %p190 = por %p188, %p189
      %p191 = scmp.ne.s32.totalorder %s177, %s178
      %p192 = scmp.eq.s32.totalorder %s29, 1
      %p193 = por %p191, %p192
      %p195 = scmp.ne.s32.totalorder %s178, %s194
      %p196 = scmp.eq.s32.totalorder %s29, 0
      %p197 = por %p195, %p196
      %p198 = scmp.le.s32.totalorder 1, %s23
      %p199 = scmp.lt.s32.totalorder %s23, 3
      %p200 = pnand %p198, %p199
      %p201 = pneg %p200
      // Predicated region
      $region9: #{tpu_custom_call.1} parent=5 // pred_check
        _
      $region10: #{tpu_custom_call.1} parent=5 // pred_check_branch
        %203 = sbr.rel (%p200) target = $region12
      $region11: #{tpu_custom_call.1} parent=5 // pred_region
        %s204 = ssub.s32 %s23, 1
        // Predicated region
        $region13: #{tpu_custom_call.1} parent=11 // pred_check
          %p205 = pneg %p70
        $region14: #{tpu_custom_call.1} parent=11 // pred_check_branch
          %207 = sbr.rel (%p205) target = $region16
        $region15: #{tpu_custom_call.1} parent=11 // pred_region
          %s209 = ssub.s32 2048, 2048
          %210 = vsyncadd [#allocation6], %s209
          %s211 = sshll.u32 [#allocation5], 4
          %s212 = int_to_ptr.vmem [resolvable:$true] %s211
          %217 = dma.hbm_to_vmem [thread:$0]  %s1, 2048, %s212, [#allocation6], 128, 128, 8
        $region16: #{tpu_custom_call.1} parent=11 // pred_fallthru
          _
        // Predicated region
        $region17: #{tpu_custom_call.1} parent=11 // pred_check
          %p218 = pneg %p91
        $region18: #{tpu_custom_call.1} parent=11 // pred_check_branch
          %220 = sbr.rel (%p218) target = $region20
        $region19: #{tpu_custom_call.1} parent=11 // pred_region
          _
        $region20: #{tpu_custom_call.1} parent=11 // pred_fallthru
          _
        // Predicated region
        $region21: #{tpu_custom_call.1} parent=11 // pred_check
          %p221 = pneg %p112
        $region22: #{tpu_custom_call.1} parent=11 // pred_check_branch
          %223 = sbr.rel (%p221) target = $region24
        $region23: #{tpu_custom_call.1} parent=11 // pred_region
          _
        $region24: #{tpu_custom_call.1} parent=11 // pred_fallthru
          _
      $region12: #{tpu_custom_call.1} parent=5 // pred_fallthru
        _
      %p224 = scmp.lt.s32.totalorder %s23, 2
      // Predicated region
      $region25: #{tpu_custom_call.1} parent=5 // pred_check
        %p225 = pneg %p224
      $region26: #{tpu_custom_call.1} parent=5 // pred_check_branch
        %227 = sbr.rel (%p225) target = $region28
      $region27: #{tpu_custom_call.1} parent=5 // pred_region
        // Predicated region
        $region29: #{tpu_custom_call.1} parent=27 // pred_check
          %p228 = pneg %p43
        $region30: #{tpu_custom_call.1} parent=27 // pred_check_branch
          %230 = sbr.rel (%p228) target = $region32
        $region31: #{tpu_custom_call.1} parent=27 // pred_region
          %s231 = sand.u32 %s33, 1
          %s232 = scalar_lea.sflag [#allocation3], %s231
          %s233 = sand.u32 %s33, 1
          %s234 = smul.addr %s233, 16
          %s235 = scalar_lea.vmem [#allocation2], %s234
          %s237 = ssub.s32 256, 256
          %238 = vsyncadd %s232, %s237
          %s239 = smul.addr %s23, 2
          %s240 = smul.addr %s239, 128
          %s241 = scalar_lea.hbm %s0, %s240
          %s242 = sshll.u32 %s235, 4
          %s243 = int_to_ptr.vmem [resolvable:$true] %s242
          %248 = dma.hbm_to_vmem [thread:$0]  %s241, 256, %s243, %s232, 128, 128, 8
        $region32: #{tpu_custom_call.1} parent=27 // pred_fallthru
          _
      $region28: #{tpu_custom_call.1} parent=5 // pred_fallthru
        _
      %p249 = scmp.le.s32.totalorder 1, %s23
      %p250 = scmp.lt.s32.totalorder %s23, 3
      %p251 = pnand %p249, %p250
      %p252 = pneg %p251
      // Predicated region
      $region33: #{tpu_custom_call.1} parent=5 // pred_check
        _
      $region34: #{tpu_custom_call.1} parent=5 // pred_check_branch
        %254 = sbr.rel (%p251) target = $region36
      $region35: #{tpu_custom_call.1} parent=5 // pred_region
        %s255 = ssub.s32 %s23, 1
        %s256 = sand.u32 %s36, 1
        %s257 = scalar_lea.sflag [#allocation3], %s256
        %s258 = sand.u32 %s36, 1
        %s259 = smul.addr %s258, 16
        %s260 = scalar_lea.vmem [#allocation2], %s259
        // Predicated region
        $region37: #{tpu_custom_call.1} parent=35 // pred_check
          %p261 = pneg %p49
        $region38: #{tpu_custom_call.1} parent=35 // pred_check_branch
          %263 = sbr.rel (%p261) target = $region40
        $region39: #{tpu_custom_call.1} parent=35 // pred_region
          %264 = dma.done %s257, 256
        $region40: #{tpu_custom_call.1} parent=35 // pred_fallthru
          _
        // Predicated region
        $region41: #{tpu_custom_call.1} parent=35 // pred_check
          %p265 = pneg %p70
        $region42: #{tpu_custom_call.1} parent=35 // pred_check_branch
          %267 = sbr.rel (%p265) target = $region44
        $region43: #{tpu_custom_call.1} parent=35 // pred_region
          %268 = dma.done [#allocation6], 2048
        $region44: #{tpu_custom_call.1} parent=35 // pred_fallthru
          _
        %s269 = sand.u32 %s36, 1
        %s270 = scalar_lea.sflag [#allocation3], %s269
        %s271 = sand.u32 %s36, 1
        %s272 = smul.addr %s271, 16
        %s273 = scalar_lea.vmem [#allocation2], %s272
        %p274 = pneg %p49
        %p275 = pneg %p46
        %p276 = pneg %p70
        %p277 = pneg %p67
        %p278 = pneg %p91
        %p279 = pneg %p88
        %p280 = pneg %p112
        %p281 = pneg %p109
        %p282 = pneg %p138
        %p283 = pneg %p135
        %s284 = sand.u32 %s125, 1
        %s285 = scalar_lea.sflag [#allocation4], %s284
        %s286 = sand.u32 %s125, 1
        %s287 = smul.addr %s286, 16
        %s288 = scalar_lea.vmem [#allocation7], %s287
        %p289 = pneg %p164
        %p290 = pneg %p161
        %s291 = sand.u32 %s28, 1
        %s292 = scalar_lea.sflag [#allocation9], %s291
        %s293 = sand.u32 %s151, 1
        %s294 = scalar_lea.vmem [#allocation8], %s293
        %p295 = pneg %p190
        %p296 = pneg %p187
        %s297 = sand.u32 %s28, 1
        %s298 = scalar_lea.sflag [#allocation9], %s297
        %s299 = sand.u32 %s177, 1
        %s300 = scalar_lea.vmem [#allocation10], %s299
        %v302 = vld [vmem:[%s260] sm:$0xff]
        %v303 = vld [vmem:[%s260 + $0x8] sm:$0xff]
        %v304 = vpack.c.bf16 %v303, %v302
        %v305 = vld [vmem:[#allocation5] sm:$0xff]
        %v306 = vld [vmem:[#allocation5 + $0x8] sm:$0xff]
        %v307 = vld [vmem:[#allocation5 + $0x10] sm:$0xff]
        %v308 = vld [vmem:[#allocation5 + $0x18] sm:$0xff]
        %v309 = vld [vmem:[#allocation5 + $0x20] sm:$0xff]
        %v310 = vld [vmem:[#allocation5 + $0x28] sm:$0xff]
        %v311 = vld [vmem:[#allocation5 + $0x30] sm:$0xff]
        %v312 = vld [vmem:[#allocation5 + $0x38] sm:$0xff]
        %v313 = vld [vmem:[#allocation5 + $0x40] sm:$0xff]
        %v314 = vld [vmem:[#allocation5 + $0x48] sm:$0xff]
        %v315 = vld [vmem:[#allocation5 + $0x50] sm:$0xff]
        %v316 = vld [vmem:[#allocation5 + $0x58] sm:$0xff]
        %v317 = vld [vmem:[#allocation5 + $0x60] sm:$0xff]
        %v318 = vld [vmem:[#allocation5 + $0x68] sm:$0xff]
        %v319 = vld [vmem:[#allocation5 + $0x70] sm:$0xff]
        %v320 = vld [vmem:[#allocation5 + $0x78] sm:$0xff]
        %v321 = vld [vmem:[%s2] sm:$0x3]
        %v323 = vlaneseq
        %v324 = vshrl.u32 %v323, 7
        %v325 = vsub.s32 0, %v324
        %v326 = vrot.slane %v321, %v325
        %v327 = vlaneseq
        %v328 = vshrl.u32 %v327, 7
        %v329 = vsub.s32 1, %v328
        %v330 = vrot.slane %v321, %v329
        %v349 = vunpack.c.l.b16 %v305
        %v350 = vunpack.c.h.b16 %v305
        %v351 = vunpack.c.l.b16 %v306
        %v352 = vunpack.c.h.b16 %v306
        %v353 = vunpack.c.l.b16 %v307
        %v354 = vunpack.c.h.b16 %v307
        %v355 = vunpack.c.l.b16 %v308
        %v356 = vunpack.c.h.b16 %v308
        %v357 = vunpack.c.l.b16 %v309
        %v358 = vunpack.c.h.b16 %v309
        %v359 = vunpack.c.l.b16 %v310
        %v360 = vunpack.c.h.b16 %v310
        %v361 = vunpack.c.l.b16 %v311
        %v362 = vunpack.c.h.b16 %v311
        %v363 = vunpack.c.l.b16 %v312
        %v364 = vunpack.c.h.b16 %v312
        %v365 = vunpack.c.l.b16 %v313
        %v366 = vunpack.c.h.b16 %v313
        %v367 = vunpack.c.l.b16 %v314
        %v368 = vunpack.c.h.b16 %v314
        %v369 = vunpack.c.l.b16 %v315
        %v370 = vunpack.c.h.b16 %v315
        %v371 = vunpack.c.l.b16 %v316
        %v372 = vunpack.c.h.b16 %v316
        %v373 = vunpack.c.l.b16 %v317
        %v374 = vunpack.c.h.b16 %v317
        %v375 = vunpack.c.l.b16 %v318
        %v376 = vunpack.c.h.b16 %v318
        %v377 = vunpack.c.l.b16 %v319
        %v378 = vunpack.c.h.b16 %v319
        %v379 = vunpack.c.l.b16 %v320
        %v380 = vunpack.c.h.b16 %v320
        %v381 = vpack.c.b16 %v351, %v349
        %v382 = vpack.c.b16 %v352, %v350
        %v383 = vpack.c.b16 %v355, %v353
        %v384 = vpack.c.b16 %v356, %v354
        %v385 = vpack.c.b16 %v359, %v357
        %v386 = vpack.c.b16 %v360, %v358
        %v387 = vpack.c.b16 %v363, %v361
        %v388 = vpack.c.b16 %v364, %v362
        %v389 = vpack.c.b16 %v367, %v365
        %v390 = vpack.c.b16 %v368, %v366
        %v391 = vpack.c.b16 %v371, %v369
        %v392 = vpack.c.b16 %v372, %v370
        %v393 = vpack.c.b16 %v375, %v373
        %v394 = vpack.c.b16 %v376, %v374
        %v395 = vpack.c.b16 %v379, %v377
        %v396 = vpack.c.b16 %v380, %v378
        %413 = vmatprep.subr.bf16.mxu0 %v382
        %414 = vmatpush1.bf16.msra.mxu0 %v381
        %415 = vmatprep.subr.bf16.mxu0 %v384
        %416 = vmatpush1.bf16.msra.mxu0 %v383
        %417 = vmatprep.subr.bf16.mxu0 %v386
        %418 = vmatpush1.bf16.msra.mxu0 %v385
        %419 = vmatprep.subr.bf16.mxu0 %v388
        %420 = vmatpush1.bf16.msra.mxu0 %v387
        %421 = vmatprep.subr.bf16.mxu0 %v390
        %422 = vmatpush1.bf16.msra.mxu0 %v389
        %423 = vmatprep.subr.bf16.mxu0 %v392
        %424 = vmatpush1.bf16.msra.mxu0 %v391
        %425 = vmatprep.subr.bf16.mxu0 %v394
        %426 = vmatpush1.bf16.msra.mxu0 %v393
        %427 = vmatprep.subr.bf16.mxu0 %v396
        %428 = vmatpush1.bf16.msra.mxu0 %v395
        %429 = vmatprep.subr.bf16.mxu0 0
        %430 = vmatpush1.bf16.msra.mxu0 0
        %431 = vmatprep.subr.bf16.mxu0 0
        %432 = vmatpush1.bf16.msra.mxu0 0
        %433 = vmatprep.subr.bf16.mxu0 0
        %434 = vmatpush1.bf16.msra.mxu0 0
        %435 = vmatprep.subr.bf16.mxu0 0
        %436 = vmatpush1.bf16.msra.mxu0 0
        %437 = vmatprep.subr.bf16.mxu0 0
        %438 = vmatpush1.bf16.msra.mxu0 0
        %439 = vmatprep.subr.bf16.mxu0 0
        %440 = vmatpush1.bf16.msra.mxu0 0
        %441 = vmatprep.subr.bf16.mxu0 0
        %442 = vmatpush1.bf16.msra.mxu0 0
        %443 = vmatprep.subr.bf16.mxu0 0
        %444 = vmatpush1.bf16.msra.mxu0 0
        %445 = vmatprep.mubr.bf16.mxu0 0
        %446 = vmatmul.mubr.bf16.gmra.mrb[0].mxu0 %v304
        %v447 = vpop.f32.mrb[0].mxu0
        %v448 = vadd.f32 %v326, %v447
        %v449 = vpop.f32.mrb[0].mxu0
        %v450 = vadd.f32 %v330, %v449
        %v451 = vpop.f32.mrb[0].mxu0
        %v452 = vadd.f32 %v326, %v451
        %v453 = vpop.f32.mrb[0].mxu0
        %v454 = vadd.f32 %v330, %v453
        %455 = vdwg.mxu0
        %v456 = vxor.u32 %v450, 2147483648
        %v457 = vxor.u32 %v454, 2147483648
        %v458 = vmul.f32 %v456, 1.442695
        %v459 = vpow.pop %v458
        %v460 = vmul.f32 %v457, 1.442695
        %v461 = vpow.pop %v460
        %v462 = vadd.f32 %v459, 1.0
        %v463 = vadd.f32 %v461, 1.0
        %v464 = vrcp.pop %v462
        %v465 = vmul.f32 1.0, %v464
        %v466 = vrcp.pop %v463
        %v467 = vmul.f32 1.0, %v466
        %v468 = vmul.f32 %v448, %v465
        %v469 = vmul.f32 %v452, %v467
        %v470 = vld [vmem:[%s3] sm:$0x7f]
        %v471 = vlaneseq
        %v472 = vshrl.u32 %v471, 7
        %v473 = vadd.s32 %v472, 8
        %v474 = vrot.slane %v468, 5
        %v475 = vrot.slane %v469, 5
        %vm476 = vcmp.lt.s32.totalorder %v472, 3
        %v477 = vsel %vm476, %v474, %v475
        %v478 = vsel %vm476, %v475, %v474
        %vm479 = vcmp.ge.s32.totalorder %v472, 3
        %vm480 = vcmp.ge.s32.totalorder %v473, 3
        %v481 = vsel %vm479, %v478, 0.0
        %v482 = vsel %vm480, %v477, 0.0
        %v483 = vlaneseq
        %v484 = vshrl.u32 %v483, 7
        %v485 = vsub.s32 0, %v484
        %v486 = vrot.slane %v470, %v485
        %v487 = vmul.f32 %v481, %v486
        %v488 = vmul.f32 %v482, %v486
        %v489 = vadd.f32 %v487, 0.0
        %v490 = vadd.f32 %v488, 0.0
        %v491 = vrot.slane %v468, 6
        %v492 = vrot.slane %v469, 6
        %vm493 = vcmp.lt.s32.totalorder %v472, 2
        %v494 = vsel %vm493, %v491, %v492
        %v495 = vsel %vm493, %v492, %v491
        %vm496 = vcmp.ge.s32.totalorder %v472, 2
        %vm497 = vcmp.ge.s32.totalorder %v473, 2
        %v498 = vsel %vm496, %v495, 0.0
        %v499 = vsel %vm497, %v494, 0.0
        %v500 = vlaneseq
        %v501 = vshrl.u32 %v500, 7
        %v502 = vsub.s32 1, %v501
        %v503 = vrot.slane %v470, %v502
        %v504 = vmul.f32 %v498, %v503
        %v505 = vmul.f32 %v499, %v503
        %v506 = vadd.f32 %v489, %v504
        %v507 = vadd.f32 %v490, %v505
        %v508 = vrot.slane %v468, 7
        %v509 = vrot.slane %v469, 7
        %vm510 = vcmp.lt.s32.totalorder %v472, 1
        %v511 = vsel %vm510, %v508, %v509
        %v512 = vsel %vm510, %v509, %v508
        %vm513 = vcmp.ge.s32.totalorder %v472, 1
        %vm514 = vcmp.ge.s32.totalorder %v473, 1
        %v515 = vsel %vm513, %v512, 0.0
        %v516 = vsel %vm514, %v511, 0.0
        %v517 = vlaneseq
        %v518 = vshrl.u32 %v517, 7
        %v519 = vsub.s32 2, %v518
        %v520 = vrot.slane %v470, %v519
        %v521 = vmul.f32 %v515, %v520
        %v522 = vmul.f32 %v516, %v520
        %v523 = vadd.f32 %v506, %v521
        %v524 = vadd.f32 %v507, %v522
        %v525 = vlaneseq
        %v526 = vshrl.u32 %v525, 7
        %v527 = vsub.s32 3, %v526
        %v528 = vrot.slane %v470, %v527
        %v529 = vmul.f32 %v468, %v528
        %v530 = vmul.f32 %v469, %v528
        %v531 = vadd.f32 %v523, %v529
        %v532 = vadd.f32 %v524, %v530
        %v533 = vrot.slane %v468, 1
        %v534 = vrot.slane %v469, 1
        %vm535 = vcmp.lt.s32.totalorder %v472, 7
        %v536 = vsel %vm535, %v533, %v534
        %v537 = vsel %vm535, %v534, %v533
        %vm538 = vcmp.lt.s32.totalorder %v472, 15
        %vm539 = vcmp.lt.s32.totalorder %v473, 15
        %v540 = vsel %vm538, %v536, 0.0
        %v541 = vsel %vm539, %v537, 0.0
        %v542 = vlaneseq
        %v543 = vshrl.u32 %v542, 7
        %v544 = vsub.s32 4, %v543
        %v545 = vrot.slane %v470, %v544
        %v546 = vmul.f32 %v540, %v545
        %v547 = vmul.f32 %v541, %v545
        %v548 = vadd.f32 %v531, %v546
        %v549 = vadd.f32 %v532, %v547
        %v550 = vrot.slane %v468, 2
        %v551 = vrot.slane %v469, 2
        %vm552 = vcmp.lt.s32.totalorder %v472, 6
        %v553 = vsel %vm552, %v550, %v551
        %v554 = vsel %vm552, %v551, %v550
        %vm555 = vcmp.lt.s32.totalorder %v472, 14
        %vm556 = vcmp.lt.s32.totalorder %v473, 14
        %v557 = vsel %vm555, %v553, 0.0
        %v558 = vsel %vm556, %v554, 0.0
        %v559 = vlaneseq
        %v560 = vshrl.u32 %v559, 7
        %v561 = vsub.s32 5, %v560
        %v562 = vrot.slane %v470, %v561
        %v563 = vmul.f32 %v557, %v562
        %v564 = vmul.f32 %v558, %v562
        %v565 = vadd.f32 %v548, %v563
        %v566 = vadd.f32 %v549, %v564
        %v567 = vrot.slane %v468, 3
        %v568 = vrot.slane %v469, 3
        %vm569 = vcmp.lt.s32.totalorder %v472, 5
        %v570 = vsel %vm569, %v567, %v568
        %v571 = vsel %vm569, %v568, %v567
        %vm572 = vcmp.lt.s32.totalorder %v472, 13
        %vm573 = vcmp.lt.s32.totalorder %v473, 13
        %v574 = vsel %vm572, %v570, 0.0
        %v575 = vsel %vm573, %v571, 0.0
        %v576 = vlaneseq
        %v577 = vshrl.u32 %v576, 7
        %v578 = vsub.s32 6, %v577
        %v579 = vrot.slane %v470, %v578
        %v580 = vmul.f32 %v574, %v579
        %v581 = vmul.f32 %v575, %v579
        %v582 = vadd.f32 %v565, %v580
        %v583 = vadd.f32 %v566, %v581
        %584 = vst [vmem:[%s288] sm:$0xff] %v582
        %585 = vst [vmem:[%s288 + $0x8] sm:$0xff] %v583
        %v586 = vadd.f32 %v582, %v583
        %v587 = vrot.slane %v586, 4
        %v588 = vadd.f32 %v586, %v587
        %v589 = vrot.slane %v588, 2
        %v590 = vadd.f32 %v588, %v589
        %v591 = vrot.slane %v590, 1
        %v592 = vadd.f32 %v590, %v591
        %593 = vst [vmem:[%s294] sm:$0x1] %v592
        %v594 = vmul.f32 %v582, %v582
        %v595 = vmul.f32 %v583, %v583
        %v596 = vadd.f32 %v594, %v595
        %v597 = vrot.slane %v596, 4
        %v598 = vadd.f32 %v596, %v597
        %v599 = vrot.slane %v598, 2
        %v600 = vadd.f32 %v598, %v599
        %v601 = vrot.slane %v600, 1
        %v602 = vadd.f32 %v600, %v601
        %603 = vst [vmem:[%s300] sm:$0x1] %v602
        %s604 = sand.u32 %s125, 1
        %s605 = scalar_lea.sflag [#allocation4], %s604
        %s606 = sand.u32 %s125, 1
        %s607 = smul.addr %s606, 16
        %s608 = scalar_lea.vmem [#allocation7], %s607
        %s609 = sand.u32 %s28, 1
        %s610 = scalar_lea.sflag [#allocation9], %s609
        %s611 = sand.u32 %s151, 1
        %s612 = scalar_lea.vmem [#allocation8], %s611
        %s613 = sand.u32 %s28, 1
        %s614 = scalar_lea.sflag [#allocation9], %s613
        %s615 = sand.u32 %s177, 1
        %s616 = scalar_lea.vmem [#allocation10], %s615
        // Predicated region
        $region45: #{tpu_custom_call.1} parent=35 // pred_check
          %p617 = pneg %p135
        $region46: #{tpu_custom_call.1} parent=35 // pred_check_branch
          %619 = sbr.rel (%p617) target = $region48
        $region47: #{tpu_custom_call.1} parent=35 // pred_region
          %s621 = ssub.s32 256, 256
          %622 = vsyncadd %s605, %s621
          %s623 = smul.addr %s28, 2
          %s624 = smul.addr %s623, 128
          %s625 = scalar_lea.hbm %s4, %s624
          %s626 = sshll.u32 %s608, 4
          %s627 = int_to_ptr.vmem [resolvable:$true] %s626
          %632 = dma.vmem_to_hbm [thread:$0]  %s627, 256, %s625, %s605, 128, 128, 8
        $region48: #{tpu_custom_call.1} parent=35 // pred_fallthru
          _
        // Predicated region
        $region49: #{tpu_custom_call.1} parent=35 // pred_check
          %p633 = pneg %p161
        $region50: #{tpu_custom_call.1} parent=35 // pred_check_branch
          %635 = sbr.rel (%p633) target = $region52
        $region51: #{tpu_custom_call.1} parent=35 // pred_region
          %s637 = ssub.s32 16, 16
          %638 = vsyncadd %s610, %s637
          %s639 = smul.addr %s28, 16
          %s640 = scalar_lea.hbm %s5, %s639
          %s642 = sshll.u32 %s612, 4
          %s643 = int_to_ptr.vmem [resolvable:$true] %s642
          %645 = dma.vmem_to_hbm [thread:$0]  %s643, 16, %s640, %s610
        $region52: #{tpu_custom_call.1} parent=35 // pred_fallthru
          _
        // Predicated region
        $region53: #{tpu_custom_call.1} parent=35 // pred_check
          %p646 = pneg %p187
        $region54: #{tpu_custom_call.1} parent=35 // pred_check_branch
          %648 = sbr.rel (%p646) target = $region56
        $region55: #{tpu_custom_call.1} parent=35 // pred_region
          %s650 = ssub.s32 16, 16
          %651 = vsyncadd %s614, %s650
          %s652 = smul.addr %s28, 16
          %s653 = scalar_lea.hbm %s6, %s652
          %s655 = sshll.u32 %s616, 4
          %s656 = int_to_ptr.vmem [resolvable:$true] %s655
          %658 = dma.vmem_to_hbm [thread:$0]  %s656, 16, %s653, %s614
        $region56: #{tpu_custom_call.1} parent=35 // pred_fallthru
          _
      $region36: #{tpu_custom_call.1} parent=5 // pred_fallthru
        _
      %p659 = scmp.le.s32.totalorder 2, %s23
      // Predicated region
      $region57: #{tpu_custom_call.1} parent=5 // pred_check
        %p660 = pneg %p659
      $region58: #{tpu_custom_call.1} parent=5 // pred_check_branch
        %662 = sbr.rel (%p660) target = $region60
      $region59: #{tpu_custom_call.1} parent=5 // pred_region
        %s663 = ssub.s32 %s23, 2
        // Predicated region
        $region61: #{tpu_custom_call.1} parent=59 // pred_check
          %p664 = pneg %p141
        $region62: #{tpu_custom_call.1} parent=59 // pred_check_branch
          %666 = sbr.rel (%p664) target = $region64
        $region63: #{tpu_custom_call.1} parent=59 // pred_region
          %s667 = sand.u32 %s126, 1
          %s668 = scalar_lea.sflag [#allocation4], %s667
          %s669 = sand.u32 %s126, 1
          %s670 = smul.addr %s669, 16
          %s671 = scalar_lea.vmem [#allocation7], %s670
          %672 = dma.done %s668, 256
        $region64: #{tpu_custom_call.1} parent=59 // pred_fallthru
          _
        // Predicated region
        $region65: #{tpu_custom_call.1} parent=59 // pred_check
          %p673 = pneg %p167
        $region66: #{tpu_custom_call.1} parent=59 // pred_check_branch
          %675 = sbr.rel (%p673) target = $region68
        $region67: #{tpu_custom_call.1} parent=59 // pred_region
          %s676 = sand.u32 %s29, 1
          %s677 = scalar_lea.sflag [#allocation9], %s676
          %s678 = sand.u32 %s152, 1
          %s679 = scalar_lea.vmem [#allocation8], %s678
          %680 = dma.done %s677, 16
        $region68: #{tpu_custom_call.1} parent=59 // pred_fallthru
          _
        // Predicated region
        $region69: #{tpu_custom_call.1} parent=59 // pred_check
          %p681 = pneg %p193
        $region70: #{tpu_custom_call.1} parent=59 // pred_check_branch
          %683 = sbr.rel (%p681) target = $region72
        $region71: #{tpu_custom_call.1} parent=59 // pred_region
          %s684 = sand.u32 %s29, 1
          %s685 = scalar_lea.sflag [#allocation9], %s684
          %s686 = sand.u32 %s178, 1
          %s687 = scalar_lea.vmem [#allocation10], %s686
          %688 = dma.done %s685, 16
        $region72: #{tpu_custom_call.1} parent=59 // pred_fallthru
          _
      $region60: #{tpu_custom_call.1} parent=5 // pred_fallthru
        _
    $region6: #{tpu_custom_call.1} parent=1 // loop_footer
      %s27 = sadd.s32 1, %s23
    $region7: #{tpu_custom_call.1} parent=1 // loop_footer_branch
      %22 = sbr.rel target = $region3
    $region8: #{tpu_custom_call.1} parent=1 // loop_exit
      _
    %689 = vsyncpa [#allocation3], 1
    %s690 = scalar_lea.sflag [#allocation3], 1
    %691 = vsyncpa %s690, 1
    %692 = vsyncpa [#allocation6], 1
    %693 = vsyncpa [#allocation4], 1
    %s694 = scalar_lea.sflag [#allocation4], 1
    %695 = vsyncpa %s694, 1
    %696 = vsyncpa [#allocation9], 1
    %s697 = scalar_lea.sflag [#allocation9], 1
    %698 = vsyncpa %s697, 1

</llo_original>
